<compile_context>
chip_gen: v6e
topology: v6e:2x2x1
jax: 0.10.0
libtpu: 0.0.40
codegen_flags: <defaults>
</compile_context>

<pallas_src>
import jax
import jax.numpy as jnp
from jax.experimental import pallas as pl
from jax.experimental.pallas import tpu as pltpu

LANES = 1024          # lane-dense width (multiple of 128)
MAX_TILE_ROWS = 1024  # 1024 * 1024 * 4B = 4 MiB per block
MIN_GRID_STEPS = 2    # keep >= 2 grid steps so both v7x TensorCores get work


def _logreg_kernel(x_ref, ws_ref, bs_ref, o_ref):
    # x_ref: (tr, LANES) f32 block in VMEM.
    # ws_ref/bs_ref: (1, 1) SMEM scalars holding 0.5*w and 0.5*b.
    # sigmoid(x*w + b) == 0.5 * tanh(0.5*(x*w + b)) + 0.5  (tanh -> EUP,
    # no VPU divide, no inf intermediates for large |z|).
    ws = ws_ref[0, 0]
    bs = bs_ref[0, 0]
    o_ref[...] = 0.5 * jnp.tanh(x_ref[...] * ws + bs) + 0.5


def _pick_tile_rows(rows):
    """Row-tile size: multiple of 8, <= MAX_TILE_ROWS, and small enough that
    the grid has >= MIN_GRID_STEPS steps whenever rows >= 16."""
    if rows >= 8 * MIN_GRID_STEPS:
        return min(MAX_TILE_ROWS, max(8, (rows // MIN_GRID_STEPS) // 8 * 8))
    # Small-rows path: single full-extent block ("block == full array dim"
    # exception to the (8,128) rule).  Keep this comment -- it is load-bearing.
    return rows


def logistic_regression_forward(x, weight, bias):
    """x: (..., 1) float, weight: (1, 1), bias: (1,) -> sigmoid(x @ W^T + b)."""
    orig_shape = x.shape
    x_flat = x.reshape(-1).astype(jnp.float32)
    n = x_flat.shape[0]

    w = weight.astype(jnp.float32).reshape(1, 1)
    b = bias.astype(jnp.float32).reshape(1, 1)
    ws = 0.5 * w          # (1, 1) scalars for the kernel (SMEM)
    bs = 0.5 * b

    n_main = (n // LANES) * LANES   # lane-aligned prefix handled by the kernel
    parts = []

    if n_main > 0:
        rows = n_main // LANES
        tr = _pick_tile_rows(rows)
        # Aligned N: pure reshape (no pad, no copy).  Ragged N: slice off the
        # aligned prefix only.
        x_main = x_flat if n_main == n else x_flat[:n_main]
        x2 = x_main.reshape(rows, LANES)

        y2 = pl.pallas_call(
            _logreg_kernel,
            out_shape=jax.ShapeDtypeStruct((rows, LANES), jnp.float32),
            grid=(pl.cdiv(rows, tr),),
            in_specs=[
                # tr is a multiple of 8 (or the full row extent) and LANES is a
                # multiple of 128 -> (8,128) rule satisfied; the last grid step
                # may be ragged and Pallas masks it.
                pl.BlockSpec((tr, LANES), lambda i: (i, 0)),
                pl.BlockSpec(memory_space=pltpu.SMEM),
                pl.BlockSpec(memory_space=pltpu.SMEM),
            ],
            out_specs=pl.BlockSpec((tr, LANES), lambda i: (i, 0)),
            compiler_params=pltpu.CompilerParams(
                dimension_semantics=("parallel",),
                vmem_limit_bytes=32 * 1024 * 1024,
            ),
        )(x2, ws, bs)
        parts.append(y2.reshape(-1))

    n_tail = n - n_main
    if n_tail > 0:
        # Sub-LANES tail (< 1024 elements): plain JAX; a padded kernel launch
        # here would be pure pad + dispatch overhead.
        x_tail = x_flat[n_main:]
        parts.append(jax.nn.sigmoid(x_tail * w[0, 0] + b[0, 0]))

    y = parts[0] if len(parts) == 1 else jnp.concatenate(parts)
    return y.reshape(orig_shape)


def _reference(x, weight, bias):
    return jax.nn.sigmoid(x.astype(jnp.float32) @ weight.T + bias)


if __name__ == "__main__":
    key = jax.random.PRNGKey(0)
    kw, kb, kx = jax.random.split(key, 3)

    # Deterministic parameter init mimicking torch.nn.Linear(1, 1):
    # uniform(-1/sqrt(in_features), 1/sqrt(in_features)) with in_features = 1.
    weight = jax.random.uniform(kw, (1, 1), jnp.float32, -1.0, 1.0)
    bias = jax.random.uniform(kb, (1,), jnp.float32, -1.0, 1.0)

    test_inputs = [
        # Canonical module usage: x = linspace(0, 10, 200) as (200, 1)
        # (sub-LANES -> plain-JAX fallback path).
        jnp.linspace(0.0, 10.0, 200, dtype=jnp.float32).reshape(200, 1),
        # Lane-aligned case exercising the Pallas kernel with a 2-step grid
        # (16384 elements -> 16 rows of the lane-dense view, 8-row tiles).
        jax.random.uniform(kx, (16384, 1), jnp.float32, -6.0, 6.0),
        # Mixed case: 2048-element aligned prefix through the kernel + a
        # 952-element tail in plain JAX.
        jax.random.uniform(kx, (3000, 1), jnp.float32, -6.0, 6.0),
    ]

    for x in test_inputs:
        y = jax.block_until_ready(logistic_regression_forward(x, weight, bias))
        y_ref = _reference(x, weight, bias)
        assert y.shape == x.shape
        assert jnp.allclose(y, y_ref, atol=1e-5, rtol=1e-5), (
            x.shape, float(jnp.max(jnp.abs(y - y_ref))))

    print("KERNEL_OK")
</pallas_src>

<mosaic_0001>
module attributes {stable_mosaic.version = 11 : i64} {
  func.func @_logreg_kernel(%arg0: i32, %arg1: memref<8x1024xf32, #tpu.memory_space<vmem>>, %arg2: memref<1x1xf32, #tpu.memory_space<smem>>, %arg3: memref<1x1xf32, #tpu.memory_space<smem>>, %arg4: memref<8x1024xf32, #tpu.memory_space<vmem>>) attributes {dimension_semantics = [#tpu.dimension_semantics<parallel>], iteration_bounds = array<i64: 2>, scalar_prefetch = 0 : i64, scratch_operands = 0 : i64, tpu.core_type = #tpu.core_type<tc>, window_params = [{transform_indices = @transform_0, window_bounds = array<i64: 8, 1024>}, {transform_indices = @transform_1, window_bounds = array<i64: 1, 1>}, {transform_indices = @transform_2, window_bounds = array<i64: 1, 1>}, {transform_indices = @transform_3, window_bounds = array<i64: 8, 1024>}]} {
    %c0 = arith.constant 0 : index
    %c0_0 = arith.constant 0 : index
    %0 = memref.load %arg2[%c0, %c0_0] : memref<1x1xf32, #tpu.memory_space<smem>>
    %c0_1 = arith.constant 0 : index
    %c0_2 = arith.constant 0 : index
    %1 = memref.load %arg3[%c0_1, %c0_2] : memref<1x1xf32, #tpu.memory_space<smem>>
    %c0_3 = arith.constant 0 : index
    %c0_4 = arith.constant 0 : index
    %2 = vector.load %arg1[%c0_3, %c0_4] : memref<8x1024xf32, #tpu.memory_space<vmem>>, vector<8x1024xf32>
    %3 = vector.broadcast %0 : f32 to vector<8x1024xf32>
    %4 = arith.mulf %2, %3 : vector<8x1024xf32>
    %5 = vector.broadcast %1 : f32 to vector<8x1024xf32>
    %6 = arith.addf %4, %5 : vector<8x1024xf32>
    %7 = math.tanh %6 : vector<8x1024xf32>
    %cst = arith.constant 5.000000e-01 : f32
    %8 = vector.broadcast %cst : f32 to vector<8x1024xf32>
    %9 = arith.mulf %8, %7 : vector<8x1024xf32>
    %cst_5 = arith.constant 5.000000e-01 : f32
    %10 = vector.broadcast %cst_5 : f32 to vector<8x1024xf32>
    %11 = arith.addf %9, %10 : vector<8x1024xf32>
    %c0_6 = arith.constant 0 : index
    %c0_7 = arith.constant 0 : index
    %12 = vector.load %arg4[%c0_6, %c0_7] : memref<8x1024xf32, #tpu.memory_space<vmem>>, vector<8x1024xf32>
    tpu.vector_store %arg4[%c0_6, %c0_7], %11 {strides = array<i32>} : memref<8x1024xf32, #tpu.memory_space<vmem>>, vector<8x1024xf32>,
    return
  }
  func.func @transform_0(%arg0: i32) -> (i32, i32) {
    %c0_i32 = arith.constant 0 : i32
    %c0_i32_0 = arith.constant 0 : i32
    return %arg0, %c0_i32 : i32, i32
  }
  func.func @transform_1(%arg0: i32) -> (i32, i32) {
    %c0_i32 = arith.constant 0 : i32
    %c0_i32_0 = arith.constant 0 : i32
    %c0_i32_1 = arith.constant 0 : i32
    return %c0_i32, %c0_i32_0 : i32, i32
  }
  func.func @transform_2(%arg0: i32) -> (i32, i32) {
    %c0_i32 = arith.constant 0 : i32
    %c0_i32_0 = arith.constant 0 : i32
    %c0_i32_1 = arith.constant 0 : i32
    return %c0_i32, %c0_i32_0 : i32, i32
  }
  func.func @transform_3(%arg0: i32) -> (i32, i32) {
    %c0_i32 = arith.constant 0 : i32
    %c0_i32_0 = arith.constant 0 : i32
    return %arg0, %c0_i32 : i32, i32
  }
}

</mosaic_0001>

<llo_original>
// kernel: tpu_custom_call.1
$region0: #{tpu_custom_call.1}
  #allocation0 [shape = 'u32[]', space=smem, size = 0x4, offset = 0x4, fixed_abs, tag = 'smem constant byte address 0x4 - core index']
  #allocation1 [shape = 'u32[144,128]{1,0:T(1,128)}', space=vmem, size = 0x12000, scoped, tag = 'internal scratch']
  #allocation2 [shape = 'f32[1,1]{1,0:T(1,128)S(6)}', space=smem, size = 0x200, scoped, tag = 'scoped memory for tpu_custom_call.1']
  #allocation3 [shape = 'f32[1,1]{1,0:T(1,128)S(6)}', space=smem, size = 0x200, scoped, tag = 'scoped memory for tpu_custom_call.1']
  %s0 = inlined_call_operand.hbm [shape: f32[16,1024], index: 0, kind: input, shape index: {}]
  %s1 = inlined_call_operand.<no memory space> [shape: f32[1,1], index: 1, kind: input, shape index: {}]
  %s2 = inlined_call_operand.<no memory space> [shape: f32[1,1], index: 2, kind: input, shape index: {}]
  %s3 = inlined_call_operand.hbm [shape: f32[16,1024], index: 3, kind: output, shape index: {}]
  %s4 = sld [smem:[#allocation0]]
  $region49: #{tpu_custom_call.1} parent=0
    _
  %s6 = ssub.s32 1, %s4
  %s7 = scalar_select 0, %s6, %s4
  %8 = sst [smem:[#allocation2]] %s1
  %9 = sst [smem:[#allocation3]] %s2
  $region1: #{tpu_custom_call.1} parent=0
    #allocation4 [shape = 'u8[65536]{0}', space=vmem, size = 0x10000, scoped, tag = 'input window, operand 0']
    #allocation5 [shape = 's32[2]{0}', space=sflag, size = 0x8, scoped, tag = 'scoped memory for tpu_custom_call.1']
    #allocation6 [shape = 's32[2]{0}', space=sflag, size = 0x8, scoped, tag = 'scoped memory for tpu_custom_call.1']
    #allocation7 [shape = 'u8[65536]{0}', space=vmem, size = 0x10000, scoped, tag = 'output window, operand 0']
    %10 = vsyncpa [#allocation5], 0
    %s11 = scalar_lea.sflag [#allocation5], 1
    %12 = vsyncpa %s11, 0
    %13 = vsyncpa [#allocation6], 0
    %s14 = scalar_lea.sflag [#allocation6], 1
    %15 = vsyncpa %s14, 0
    loop: start=0, step=1, limit=4
    $region2: #{tpu_custom_call.1} parent=1 // loop_pre_header
      _
    $region3: #{tpu_custom_call.1} parent=1 // loop_header
      %s17 = sphi 0, %s21
      %p18 = scmp.ge.s32.totalorder %s17, 4
      %s27 = sphi 0, %s29
      %s30 = sphi 0, %s27
      %s31 = sphi 0, %s30
      %s47 = sphi 0, %s31
      %s51 = sphi 0, %s51
      %s53 = sphi 0, %s51
      %s54 = sphi 0, %s53
      %s68 = sphi 0, %s54
      %s72 = sphi 0, %s72
      %s74 = sphi 0, %s72
      %s75 = sphi 0, %s74
      %s89 = sphi 0, %s75
      %s95 = sphi 0, %s97
      %s98 = sphi 0, %s95
      %s99 = sphi 0, %s98
      %s115 = sphi 0, %s99
    $region4: #{tpu_custom_call.1} parent=1 // loop_header_branch
      %20 = sbr.rel (%p18) target = $region8
    $region5: #{tpu_custom_call.1} parent=1 // loop_body
      %s22 = ssub.s32 %s17, 1
      %s23 = ssub.s32 %s17, 2
      %s24 = sadd.s32 %s17, 1
      %s25 = ssub.s32 %s17, %s24
      %p26 = scmp.eq.s32.totalorder %s25, 0
      %s28 = sadd.s32 %s27, 1
      %s29 = scalar_select %p26, %s27, %s28
      %p32 = pneg %p26
      %p33 = scmp.eq.s32.totalorder %s17, 1
      %p34 = por %p32, %p33
      %p35 = scmp.ne.s32.totalorder %s27, %s30
      %p36 = scmp.eq.s32.totalorder %s17, 0
      %p37 = por %p35, %p36
      %p38 = scmp.ne.s32.totalorder %s27, %s30
      %p39 = scmp.eq.s32.totalorder %s22, 1
      %p40 = por %p38, %p39
      %p41 = scmp.ne.s32.totalorder %s30, %s31
      %p42 = scmp.eq.s32.totalorder %s22, 0
      %p43 = por %p41, %p42
      %p44 = scmp.ne.s32.totalorder %s30, %s31
      %p45 = scmp.eq.s32.totalorder %s23, 1
      %p46 = por %p44, %p45
      %p48 = scmp.ne.s32.totalorder %s31, %s47
      %p49 = scmp.eq.s32.totalorder %s23, 0
      %p50 = por %p48, %p49
      %s52 = sadd.s32 %s51, 1
      %p55 = scmp.eq.s32.totalorder %s17, 1
      %p56 = scmp.ne.s32.totalorder %s51, %s53
      %p57 = scmp.eq.s32.totalorder %s17, 0
      %p58 = por %p56, %p57
      %p59 = scmp.ne.s32.totalorder %s51, %s53
      %p60 = scmp.eq.s32.totalorder %s22, 1
      %p61 = por %p59, %p60
      %p62 = scmp.ne.s32.totalorder %s53, %s54
      %p63 = scmp.eq.s32.totalorder %s22, 0
      %p64 = por %p62, %p63
      %p65 = scmp.ne.s32.totalorder %s53, %s54
      %p66 = scmp.eq.s32.totalorder %s23, 1
      %p67 = por %p65, %p66
      %p69 = scmp.ne.s32.totalorder %s54, %s68
      %p70 = scmp.eq.s32.totalorder %s23, 0
      %p71 = por %p69, %p70
      %s73 = sadd.s32 %s72, 1
      %p76 = scmp.eq.s32.totalorder %s17, 1
      %p77 = scmp.ne.s32.totalorder %s72, %s74
      %p78 = scmp.eq.s32.totalorder %s17, 0
      %p79 = por %p77, %p78
      %p80 = scmp.ne.s32.totalorder %s72, %s74
      %p81 = scmp.eq.s32.totalorder %s22, 1
      %p82 = por %p80, %p81
      %p83 = scmp.ne.s32.totalorder %s74, %s75
      %p84 = scmp.eq.s32.totalorder %s22, 0
      %p85 = por %p83, %p84
      %p86 = scmp.ne.s32.totalorder %s74, %s75
      %p87 = scmp.eq.s32.totalorder %s23, 1
      %p88 = por %p86, %p87
      %p90 = scmp.ne.s32.totalorder %s75, %s89
      %p91 = scmp.eq.s32.totalorder %s23, 0
      %p92 = por %p90, %p91
      %s93 = ssub.s32 %s17, %s24
      %p94 = scmp.eq.s32.totalorder %s93, 0
      %s96 = sadd.s32 %s95, 1
      %s97 = scalar_select %p94, %s95, %s96
      %p100 = pneg %p94
      %p101 = scmp.eq.s32.totalorder %s17, 1
      %p102 = por %p100, %p101
      %p103 = scmp.ne.s32.totalorder %s95, %s98
      %p104 = scmp.eq.s32.totalorder %s17, 0
      %p105 = por %p103, %p104
      %p106 = scmp.ne.s32.totalorder %s95, %s98
      %p107 = scmp.eq.s32.totalorder %s22, 1
      %p108 = por %p106, %p107
      %p109 = scmp.ne.s32.totalorder %s98, %s99
      %p110 = scmp.eq.s32.totalorder %s22, 0
      %p111 = por %p109, %p110
      %p112 = scmp.ne.s32.totalorder %s98, %s99
      %p113 = scmp.eq.s32.totalorder %s23, 1
      %p114 = por %p112, %p113
      %p116 = scmp.ne.s32.totalorder %s99, %s115
      %p117 = scmp.eq.s32.totalorder %s23, 0
      %p118 = por %p116, %p117
      %p119 = scmp.le.s32.totalorder 1, %s17
      %p120 = scmp.lt.s32.totalorder %s17, 3
      %p121 = pnand %p119, %p120
      %p122 = pneg %p121
      // Predicated region
      $region9: #{tpu_custom_call.1} parent=5 // pred_check
        _
      $region10: #{tpu_custom_call.1} parent=5 // pred_check_branch
        %124 = sbr.rel (%p121) target = $region12
      $region11: #{tpu_custom_call.1} parent=5 // pred_region
        %s125 = ssub.s32 %s17, 1
        // Predicated region
        $region13: #{tpu_custom_call.1} parent=11 // pred_check
          %p126 = pneg %p64
        $region14: #{tpu_custom_call.1} parent=11 // pred_check_branch
          %128 = sbr.rel (%p126) target = $region16
        $region15: #{tpu_custom_call.1} parent=11 // pred_region
          _
        $region16: #{tpu_custom_call.1} parent=11 // pred_fallthru
          _
        // Predicated region
        $region17: #{tpu_custom_call.1} parent=11 // pred_check
          %p129 = pneg %p85
        $region18: #{tpu_custom_call.1} parent=11 // pred_check_branch
          %131 = sbr.rel (%p129) target = $region20
        $region19: #{tpu_custom_call.1} parent=11 // pred_region
          _
        $region20: #{tpu_custom_call.1} parent=11 // pred_fallthru
          _
      $region12: #{tpu_custom_call.1} parent=5 // pred_fallthru
        _
      %p132 = scmp.lt.s32.totalorder %s17, 2
      // Predicated region
      $region21: #{tpu_custom_call.1} parent=5 // pred_check
        %p133 = pneg %p132
      $region22: #{tpu_custom_call.1} parent=5 // pred_check_branch
        %135 = sbr.rel (%p133) target = $region24
      $region23: #{tpu_custom_call.1} parent=5 // pred_region
        // Predicated region
        $region25: #{tpu_custom_call.1} parent=23 // pred_check
          %p136 = pneg %p37
        $region26: #{tpu_custom_call.1} parent=23 // pred_check_branch
          %138 = sbr.rel (%p136) target = $region28
        $region27: #{tpu_custom_call.1} parent=23 // pred_region
          %s139 = sand.u32 %s27, 1
          %s140 = scalar_lea.sflag [#allocation5], %s139
          %s141 = sand.u32 %s27, 1
          %s142 = smul.addr %s141, 64
          %s143 = scalar_lea.vmem [#allocation4], %s142
          %s145 = ssub.s32 1024, 1024
          %146 = vsyncadd %s140, %s145
          %s147 = smul.addr %s17, 8
          %s148 = smul.addr %s147, 128
          %s149 = scalar_lea.hbm %s0, %s148
          %s151 = sshll.u32 %s143, 4
          %s152 = int_to_ptr.vmem [resolvable:$true] %s151
          %154 = dma.hbm_to_vmem [thread:$0]  %s149, 1024, %s152, %s140
        $region28: #{tpu_custom_call.1} parent=23 // pred_fallthru
          _
      $region24: #{tpu_custom_call.1} parent=5 // pred_fallthru
        _
      %p155 = scmp.le.s32.totalorder 1, %s17
      %p156 = scmp.lt.s32.totalorder %s17, 3
      %p157 = pnand %p155, %p156
      %p158 = pneg %p157
      // Predicated region
      $region29: #{tpu_custom_call.1} parent=5 // pred_check
        _
      $region30: #{tpu_custom_call.1} parent=5 // pred_check_branch
        %160 = sbr.rel (%p157) target = $region32
      $region31: #{tpu_custom_call.1} parent=5 // pred_region
        %s161 = ssub.s32 %s17, 1
        %s162 = sand.u32 %s30, 1
        %s163 = scalar_lea.sflag [#allocation5], %s162
        %s164 = sand.u32 %s30, 1
        %s165 = smul.addr %s164, 64
        %s166 = scalar_lea.vmem [#allocation4], %s165
        // Predicated region
        $region33: #{tpu_custom_call.1} parent=31 // pred_check
          %p167 = pneg %p43
        $region34: #{tpu_custom_call.1} parent=31 // pred_check_branch
          %169 = sbr.rel (%p167) target = $region36
        $region35: #{tpu_custom_call.1} parent=31 // pred_region
          %170 = dma.done %s163, 1024
        $region36: #{tpu_custom_call.1} parent=31 // pred_fallthru
          _
        %s171 = sand.u32 %s30, 1
        %s172 = scalar_lea.sflag [#allocation5], %s171
        %s173 = sand.u32 %s30, 1
        %s174 = smul.addr %s173, 64
        %s175 = scalar_lea.vmem [#allocation4], %s174
        %p176 = pneg %p43
        %p177 = pneg %p40
        %p178 = pneg %p64
        %p179 = pneg %p61
        %p180 = pneg %p85
        %p181 = pneg %p82
        %p182 = pneg %p111
        %p183 = pneg %p108
        %s184 = sand.u32 %s98, 1
        %s185 = scalar_lea.sflag [#allocation6], %s184
        %s186 = sand.u32 %s98, 1
        %s187 = smul.addr %s186, 64
        %s188 = scalar_lea.vmem [#allocation7], %s187
        %s189 = sld [smem:[#allocation2]]
        %s190 = sld [smem:[#allocation3]]
        %v191 = vld [vmem:[%s166] sm:$0xff]
        %v192 = vld [vmem:[%s166 + $0x8] sm:$0xff]
        %v193 = vld [vmem:[%s166 + $0x10] sm:$0xff]
        %v194 = vld [vmem:[%s166 + $0x18] sm:$0xff]
        %v195 = vld [vmem:[%s166 + $0x20] sm:$0xff]
        %v196 = vld [vmem:[%s166 + $0x28] sm:$0xff]
        %v197 = vld [vmem:[%s166 + $0x30] sm:$0xff]
        %v198 = vld [vmem:[%s166 + $0x38] sm:$0xff]
        %v199 = vstv %s189
        %v200 = vmul.f32 %v191, %v199
        %v201 = vmul.f32 %v192, %v199
        %v202 = vmul.f32 %v193, %v199
        %v203 = vmul.f32 %v194, %v199
        %v204 = vmul.f32 %v195, %v199
        %v205 = vmul.f32 %v196, %v199
        %v206 = vmul.f32 %v197, %v199
        %v207 = vmul.f32 %v198, %v199
        %v208 = vstv %s190
        %v209 = vadd.f32 %v200, %v208
        %v210 = vadd.f32 %v201, %v208
        %v211 = vadd.f32 %v202, %v208
        %v212 = vadd.f32 %v203, %v208
        %v213 = vadd.f32 %v204, %v208
        %v214 = vadd.f32 %v205, %v208
        %v215 = vadd.f32 %v206, %v208
        %v216 = vadd.f32 %v207, %v208
        %v217 = vtanh.pop %v209
        %v218 = vtanh.pop %v210
        %v219 = vtanh.pop %v211
        %v220 = vtanh.pop %v212
        %v221 = vtanh.pop %v213
        %v222 = vtanh.pop %v214
        %v223 = vtanh.pop %v215
        %v224 = vtanh.pop %v216
        %v225 = vmul.f32 %v217, 0.5
        %v226 = vmul.f32 %v218, 0.5
        %v227 = vmul.f32 %v219, 0.5
        %v228 = vmul.f32 %v220, 0.5
        %v229 = vmul.f32 %v221, 0.5
        %v230 = vmul.f32 %v222, 0.5
        %v231 = vmul.f32 %v223, 0.5
        %v232 = vmul.f32 %v224, 0.5
        %v233 = vadd.f32 %v225, 0.5
        %v234 = vadd.f32 %v226, 0.5
        %v235 = vadd.f32 %v227, 0.5
        %v236 = vadd.f32 %v228, 0.5
        %v237 = vadd.f32 %v229, 0.5
        %v238 = vadd.f32 %v230, 0.5
        %v239 = vadd.f32 %v231, 0.5
        %v240 = vadd.f32 %v232, 0.5
        %241 = vst [vmem:[%s188] sm:$0xff] %v233
        %242 = vst [vmem:[%s188 + $0x8] sm:$0xff] %v234
        %243 = vst [vmem:[%s188 + $0x10] sm:$0xff] %v235
        %244 = vst [vmem:[%s188 + $0x18] sm:$0xff] %v236
        %245 = vst [vmem:[%s188 + $0x20] sm:$0xff] %v237
        %246 = vst [vmem:[%s188 + $0x28] sm:$0xff] %v238
        %247 = vst [vmem:[%s188 + $0x30] sm:$0xff] %v239
        %248 = vst [vmem:[%s188 + $0x38] sm:$0xff] %v240
        %s249 = sand.u32 %s98, 1
        %s250 = scalar_lea.sflag [#allocation6], %s249
        %s251 = sand.u32 %s98, 1
        %s252 = smul.addr %s251, 64
        %s253 = scalar_lea.vmem [#allocation7], %s252
        // Predicated region
        $region37: #{tpu_custom_call.1} parent=31 // pred_check
          %p254 = pneg %p108
        $region38: #{tpu_custom_call.1} parent=31 // pred_check_branch
          %256 = sbr.rel (%p254) target = $region40
        $region39: #{tpu_custom_call.1} parent=31 // pred_region
          %s258 = ssub.s32 1024, 1024
          %259 = vsyncadd %s250, %s258
          %s260 = smul.addr %s22, 8
          %s261 = smul.addr %s260, 128
          %s262 = scalar_lea.hbm %s3, %s261
          %s264 = sshll.u32 %s253, 4
          %s265 = int_to_ptr.vmem [resolvable:$true] %s264
          %267 = dma.vmem_to_hbm [thread:$0]  %s265, 1024, %s262, %s250
        $region40: #{tpu_custom_call.1} parent=31 // pred_fallthru
          _
      $region32: #{tpu_custom_call.1} parent=5 // pred_fallthru
        _
      %p268 = scmp.le.s32.totalorder 2, %s17
      // Predicated region
      $region41: #{tpu_custom_call.1} parent=5 // pred_check
        %p269 = pneg %p268
      $region42: #{tpu_custom_call.1} parent=5 // pred_check_branch
        %271 = sbr.rel (%p269) target = $region44
      $region43: #{tpu_custom_call.1} parent=5 // pred_region
        %s272 = ssub.s32 %s17, 2
        // Predicated region
        $region45: #{tpu_custom_call.1} parent=43 // pred_check
          %p273 = pneg %p114
        $region46: #{tpu_custom_call.1} parent=43 // pred_check_branch
          %275 = sbr.rel (%p273) target = $region48
        $region47: #{tpu_custom_call.1} parent=43 // pred_region
          %s276 = sand.u32 %s99, 1
          %s277 = scalar_lea.sflag [#allocation6], %s276
          %s278 = sand.u32 %s99, 1
          %s279 = smul.addr %s278, 64
          %s280 = scalar_lea.vmem [#allocation7], %s279
          %281 = dma.done %s277, 1024
        $region48: #{tpu_custom_call.1} parent=43 // pred_fallthru
          _
      $region44: #{tpu_custom_call.1} parent=5 // pred_fallthru
        _
    $region6: #{tpu_custom_call.1} parent=1 // loop_footer
      %s21 = sadd.s32 1, %s17
    $region7: #{tpu_custom_call.1} parent=1 // loop_footer_branch
      %16 = sbr.rel target = $region3
    $region8: #{tpu_custom_call.1} parent=1 // loop_exit
      _
    %282 = vsyncpa [#allocation5], 1
    %s283 = scalar_lea.sflag [#allocation5], 1
    %284 = vsyncpa %s283, 1
    %285 = vsyncpa [#allocation6], 1
    %s286 = scalar_lea.sflag [#allocation6], 1
    %287 = vsyncpa %s286, 1

</llo_original>
